<compile_context>
chip_gen: v7x
topology: tpu7x:2x2x1
jax: 0.10.0
libtpu: 0.0.40
codegen_flags: <defaults>
</compile_context>

<pallas_src>
import functools
import math

import jax
import jax.numpy as jnp
from jax import lax
from jax.experimental import pallas as pl
from jax.experimental.pallas import tpu as pltpu


# Contract lhs dim 0 with rhs dim 0 ("transposed-LHS" matmul): (L,C)x(L,D)->(C,D).
_TN_DIMS = (((0,), (0,)), ((), ()))


def _ru(v, m):
    return ((v + m - 1) // m) * m


def _vmem_limits():
    """(block budget bytes, vmem_limit_bytes) sized from the running chip."""
    try:
        phys = int(getattr(pltpu.get_tpu_info(), "vmem_capacity_bytes"))
        if phys <= 0:
            raise ValueError
    except Exception:
        phys = 64 * 1024 * 1024                    # conservative: v7x-sized VMEM
    budget = (phys * 3) // 8                       # ~48 MiB v5e/v6e, ~24 MiB v7x
    limit = min(phys // 2 + (8 << 20), budget + (16 << 20))
    return budget, int(limit)


def _choose_bt(B, L, N, M, D, in_isz, out_isz, *, max_bt, min_steps, group, budget):
    """Largest bt (divisor of B, <= cap, multiple of `group` if given) whose
    pipelined blocks fit `budget`. Returns None if no candidate qualifies."""
    V = N + M
    x_b = _ru(L, 8) * _ru(N, 128) * in_isz
    m_b = (_ru(L, 8) * _ru(M, 128) * in_isz) if M else 0
    o_b = _ru(V, 8) * _ru(D, 128) * out_isz
    acc = _ru(V, 8) * _ru(D, 128) * 4              # f32 matmul result in VMEM/vregs
    lhs = _ru(L, 8) * _ru(V, 128) * in_isz         # concatenated LHS (folded path)
    w_res = 2 * (_ru(L, 8) + 8) * _ru(D, 128) * in_isz   # weight+bias, 2 buffers
    per_b = 2 * (x_b + m_b + o_b) + acc + lhs      # inputs/outputs double-buffered
    cap = max(1, min(max_bt, max(1, B // min_steps)))
    best = None
    for c in range(1, cap + 1):
        if B % c:
            continue
        if group is not None and c % group:
            continue
        if w_res + c * per_b <= budget:
            best = c
    return best


def _embed_kernel_folded(bt, has_mark, precision, *refs):
    """One matmul per grid step: LHS = lane-concat of all batch (and mark) tiles.
    Output block is 2-D (bt*V, D) -> single dense, sublane-aligned store."""
    if has_mark:
        x_ref, xm_ref, w_ref, b_ref, o_ref = refs
    else:
        x_ref, w_ref, b_ref, o_ref = refs
        xm_ref = None

    w = w_ref[...]                                  # (L, D), grid-invariant
    b = b_ref[...]                                  # (1, D)

    pieces = []
    for i in range(bt):                             # static: bt is compile-time
        pieces.append(x_ref[i])                     # (L, N)
        if has_mark:
            pieces.append(xm_ref[i])                # (L, M)
    lhs = pieces[0] if len(pieces) == 1 else jnp.concatenate(pieces, axis=1)

    y = lax.dot_general(lhs, w, _TN_DIMS,
                        preferred_element_type=jnp.float32,
                        precision=precision)        # (bt*V, D)
    o_ref[...] = (y + b).astype(o_ref.dtype)


def _embed_kernel_looped(bt, has_mark, precision, *refs):
    """Per-batch matmul (used when bt*V can't be 8-aligned): still one matmul and
    one dense, aligned (V, D) store per batch; bias broadcast hoisted."""
    if has_mark:
        x_ref, xm_ref, w_ref, b_ref, o_ref = refs
    else:
        x_ref, w_ref, b_ref, o_ref = refs
        xm_ref = None

    w = w_ref[...]                                  # (L, D)
    V, D = o_ref.shape[1], o_ref.shape[2]
    b = jnp.broadcast_to(b_ref[...], (V, D))        # hoisted out of the loop

    def one(i):
        xi = x_ref[i]                               # (L, N)
        lhs = xi if not has_mark else jnp.concatenate([xi, xm_ref[i]], axis=1)
        y = lax.dot_general(lhs, w, _TN_DIMS,
                            preferred_element_type=jnp.float32,
                            precision=precision)    # (V, D)
        o_ref[i, :, :] = (y + b).astype(o_ref.dtype)

    if bt <= 8:
        for i in range(bt):                         # short static unroll
            one(i)
    else:
        @pl.loop(0, bt)                             # avoid code bloat for big bt
        def _(i):
            one(i)


def data_embedding_inverted(x, weight, bias, x_mark=None, *,
                            max_batch_block=64, precision=None,
                            io_dtype=None, out_dtype=None):
    """Pallas implementation of DataEmbedding_inverted.forward (eval mode).

    x:      [B, L, N]     (batch, seq_len/c_in, variates)
    weight: [d_model, L]  (PyTorch Linear convention: out x in)
    bias:   [d_model]
    x_mark: optional [B, L, M]
    returns [B, N(+M), d_model]

    precision: optional lax.Precision for bit-parity with a true f32 GEMM.
    io_dtype:  optional narrower streaming dtype (e.g. jnp.bfloat16) — this op is
               HBM-bandwidth-bound on all TPU generations, so halving bytes ~2x.
    """
    B, L, N = x.shape
    D, L_w = weight.shape
    assert L_w == L, (weight.shape, L)
    M = 0 if x_mark is None else x_mark.shape[2]
    if x_mark is not None:
        assert x_mark.shape[:2] == (B, L)
    V = N + M
    has_mark = M > 0
    out_dtype = out_dtype or x.dtype

    # One-time, grid-invariant glue (tiny): weight -> [L, D], bias -> [1, D].
    wt = jnp.transpose(weight, (1, 0))
    bias2d = bias.reshape(1, D).astype(jnp.float32)
    if io_dtype is not None:
        x = x.astype(io_dtype)
        wt = wt.astype(io_dtype)
    if has_mark:
        x_mark = x_mark.astype(x.dtype)

    in_isz = jnp.dtype(x.dtype).itemsize
    out_isz = jnp.dtype(out_dtype).itemsize
    budget, vmem_limit = _vmem_limits()

    # Folded path needs the (bt*V, D) output block 8-aligned in sublanes.
    group = 8 // math.gcd(V, 8)
    pieces_cap = max(1, 64 // (2 if has_mark else 1))   # bound concat operand count
    bt = _choose_bt(B, L, N, M, D, in_isz, out_isz,
                    max_bt=min(max_batch_block, pieces_cap),
                    min_steps=4, group=group, budget=budget)
    folded = bt is not None
    if not folded:
        bt = _choose_bt(B, L, N, M, D, in_isz, out_isz,
                        max_bt=max_batch_block, min_steps=4,
                        group=None, budget=budget) or 1
    grid = (B // bt,)

    in_specs = [pl.BlockSpec((bt, L, N), lambda b: (b, 0, 0))]
    args = [x]
    if has_mark:
        in_specs.append(pl.BlockSpec((bt, L, M), lambda b: (b, 0, 0)))
        args.append(x_mark)
    in_specs += [pl.BlockSpec((L, D), lambda b: (0, 0)),
                 pl.BlockSpec((1, D), lambda b: (0, 0))]
    args += [wt, bias2d]

    cost = pl.CostEstimate(
        flops=2 * B * V * L * D,
        transcendentals=0,
        bytes_accessed=int(x.nbytes + (x_mark.nbytes if has_mark else 0)
                           + wt.nbytes + bias2d.nbytes + B * V * D * out_isz))
    cparams = pltpu.CompilerParams(dimension_semantics=("parallel",),
                                   vmem_limit_bytes=vmem_limit)

    if folded:
        kernel = functools.partial(_embed_kernel_folded, bt, has_mark, precision)
        out2d = pl.pallas_call(
            kernel,
            out_shape=jax.ShapeDtypeStruct((B * V, D), out_dtype),
            grid_spec=pltpu.PrefetchScalarGridSpec(
                num_scalar_prefetch=0, grid=grid,
                in_specs=in_specs,
                out_specs=pl.BlockSpec((bt * V, D), lambda b: (b, 0))),
            compiler_params=cparams,
            cost_estimate=cost,
        )(*args)
        # Row-major contiguous split of the leading dim: metadata-only reshape.
        return out2d.reshape(B, V, D)

    kernel = functools.partial(_embed_kernel_looped, bt, has_mark, precision)
    return pl.pallas_call(
        kernel,
        out_shape=jax.ShapeDtypeStruct((B, V, D), out_dtype),
        grid_spec=pltpu.PrefetchScalarGridSpec(
            num_scalar_prefetch=0, grid=grid,
            in_specs=in_specs,
            out_specs=pl.BlockSpec((bt, V, D), lambda b: (b, 0, 0))),
        compiler_params=cparams,
        cost_estimate=cost,
    )(*args)


def _reference(x, weight, bias, x_mark=None):
    xp = jnp.transpose(x, (0, 2, 1))
    if x_mark is not None:
        xp = jnp.concatenate([xp, jnp.transpose(x_mark, (0, 2, 1))], axis=1)
    return jnp.einsum("bvl,dl->bvd", xp, weight) + bias


if __name__ == "__main__":
    # Small shapes: seq_len (c_in) L=16, variates N=8, mark features M=4,
    # d_model D=128 (lane-dense output).
    L, N, M, D = 16, 8, 4, 128

    key = jax.random.PRNGKey(0)
    kx, kw, kb = jax.random.split(key, 3)

    # Deterministic Linear(c_in=L -> d_model=D) init: weight [D, L], bias [D].
    bound = 1.0 / float(L) ** 0.5
    weight = jax.random.uniform(kw, (D, L), jnp.float32, -bound, bound)
    bias = jax.random.uniform(kb, (D,), jnp.float32, -bound, bound)

    def check(B, with_mark):
        kxx, kmm = jax.random.split(jax.random.fold_in(kx, B), 2)
        x = jax.random.normal(kxx, (B, L, N), dtype=jnp.float32)
        xm = (jax.random.normal(kmm, (B, L, M), dtype=jnp.float32)
              if with_mark else None)
        out = jax.block_until_ready(data_embedding_inverted(x, weight, bias, xm))
        ref = _reference(x, weight, bias, xm)
        assert out.shape == ref.shape, (out.shape, ref.shape)
        err = float(jnp.max(jnp.abs(out - ref)))
        assert jnp.allclose(out, ref, atol=2e-2, rtol=2e-2), err

    check(4, False)    # folded path (V % 8 == 0), no x_mark
    check(4, True)     # looped path (V = 12 not 8-aligned, bt = 1), with x_mark
    check(16, True)    # folded path with in-VMEM batch + x_mark concat (bt = 4)
    print("KERNEL_OK")
</pallas_src>

<mosaic_0001>
module attributes {stable_mosaic.version = 11 : i64} {
  func.func @_embed_kernel_folded(%arg0: i32, %arg1: memref<1x16x8xf32, #tpu.memory_space<vmem>>, %arg2: memref<16x128xf32, #tpu.memory_space<vmem>>, %arg3: memref<1x128xf32, #tpu.memory_space<vmem>>, %arg4: memref<8x128xf32, #tpu.memory_space<vmem>>) attributes {dimension_semantics = [#tpu.dimension_semantics<parallel>], iteration_bounds = array<i64: 4>, scalar_prefetch = 0 : i64, scratch_operands = 0 : i64, tpu.core_type = #tpu.core_type<tc>, window_params = [{transform_indices = @transform_0, window_bounds = array<i64: 1, 16, 8>}, {pipeline_mode = #tpu.pipeline_mode<synchronous>, transform_indices = @transform_1, window_bounds = array<i64: 16, 128>}, {pipeline_mode = #tpu.pipeline_mode<synchronous>, transform_indices = @transform_2, window_bounds = array<i64: 1, 128>}, {transform_indices = @transform_3, window_bounds = array<i64: 8, 128>}]} {
    %c0 = arith.constant 0 : index
    %c0_0 = arith.constant 0 : index
    %0 = vector.load %arg2[%c0, %c0_0] : memref<16x128xf32, #tpu.memory_space<vmem>>, vector<16x128xf32>
    %c0_1 = arith.constant 0 : index
    %c0_2 = arith.constant 0 : index
    %1 = vector.load %arg3[%c0_1, %c0_2] : memref<1x128xf32, #tpu.memory_space<vmem>>, vector<1x128xf32>
    %c0_3 = arith.constant 0 : index
    %c0_4 = arith.constant 0 : index
    %c0_5 = arith.constant 0 : index
    %2 = vector.load %arg1[%c0_3, %c0_4, %c0_5] : memref<1x16x8xf32, #tpu.memory_space<vmem>>, vector<1x16x8xf32>
    %3 = vector.shape_cast %2 : vector<1x16x8xf32> to vector<16x8xf32>
    %cst = arith.constant dense<0.000000e+00> : vector<8x128xf32>
    %4 = tpu.matmul %3, %0, %cst {dimension_numbers = #tpu.dot_dimension_numbers<[0], [0], [1], [1], [0, 1, 1, 1], [], []>} : vector<16x8xf32>, vector<16x128xf32>, vector<8x128xf32> -> vector<8x128xf32>
    %5 = vector.broadcast %1 : vector<1x128xf32> to vector<8x128xf32>
    %6 = arith.addf %4, %5 : vector<8x128xf32>
    %c0_6 = arith.constant 0 : index
    %c0_7 = arith.constant 0 : index
    %7 = vector.load %arg4[%c0_6, %c0_7] : memref<8x128xf32, #tpu.memory_space<vmem>>, vector<8x128xf32>
    tpu.vector_store %arg4[%c0_6, %c0_7], %6 {strides = array<i32>} : memref<8x128xf32, #tpu.memory_space<vmem>>, vector<8x128xf32>,
    return
  }
  func.func @transform_0(%arg0: i32) -> (i32, i32, i32) {
    %c0_i32 = arith.constant 0 : i32
    %c0_i32_0 = arith.constant 0 : i32
    %c0_i32_1 = arith.constant 0 : i32
    return %arg0, %c0_i32, %c0_i32_0 : i32, i32, i32
  }
  func.func @transform_1(%arg0: i32) -> (i32, i32) {
    %c0_i32 = arith.constant 0 : i32
    %c0_i32_0 = arith.constant 0 : i32
    %c0_i32_1 = arith.constant 0 : i32
    return %c0_i32, %c0_i32_0 : i32, i32
  }
  func.func @transform_2(%arg0: i32) -> (i32, i32) {
    %c0_i32 = arith.constant 0 : i32
    %c0_i32_0 = arith.constant 0 : i32
    %c0_i32_1 = arith.constant 0 : i32
    return %c0_i32, %c0_i32_0 : i32, i32
  }
  func.func @transform_3(%arg0: i32) -> (i32, i32) {
    %c0_i32 = arith.constant 0 : i32
    %c0_i32_0 = arith.constant 0 : i32
    return %arg0, %c0_i32 : i32, i32
  }
}

</mosaic_0001>

<llo_original>
// kernel: tpu_custom_call.1
$region0: #{tpu_custom_call.1}
  #allocation0 [shape = 'u32[]', space=smem, size = 0x4, offset = 0x4, fixed_abs, tag = 'smem constant byte address 0x4 - core index']
  #allocation1 [shape = 'u32[144,128]{1,0:T(1,128)}', space=vmem, size = 0x12000, scoped, tag = 'internal scratch']
  %s0 = inlined_call_operand.vmem [shape: f32[4,16,8], index: 0, kind: input, shape index: {}]
  %s1 = inlined_call_operand.vmem [shape: f32[16,128], index: 1, kind: input, shape index: {}]
  %s2 = inlined_call_operand.vmem [shape: f32[1,128], index: 2, kind: input, shape index: {}]
  %s3 = inlined_call_operand.hbm [shape: f32[32,128], index: 3, kind: output, shape index: {}]
  %s4 = sld [smem:[#allocation0]]
  $region45: #{tpu_custom_call.1} parent=0
    _
  %s6 = ssub.s32 1, %s4
  %s7 = scalar_select 0, %s6, %s4
  $region1: #{tpu_custom_call.1} parent=0
    #allocation2 [shape = 'u8[8192]{0}', space=vmem, size = 0x2000, scoped, tag = 'output window, operand 0']
    #allocation3 [shape = 's32[2]{0}', space=sflag, size = 0x8, scoped, tag = 'scoped memory for tpu_custom_call.1']
    %8 = vsyncpa [#allocation3], 0
    %s9 = scalar_lea.sflag [#allocation3], 1
    %10 = vsyncpa %s9, 0
    loop: start=0, step=1, limit=6
    $region2: #{tpu_custom_call.1} parent=1 // loop_pre_header
      _
    $region3: #{tpu_custom_call.1} parent=1 // loop_header
      %s12 = sphi 0, %s16
      %p13 = scmp.ge.s32.totalorder %s12, 6
      %s22 = sphi 0, %s24
      %s25 = sphi 0, %s22
      %s26 = sphi 0, %s25
      %s42 = sphi 0, %s26
      %s46 = sphi 0, %s46
      %s48 = sphi 0, %s46
      %s49 = sphi 0, %s48
      %s63 = sphi 0, %s49
      %s67 = sphi 0, %s67
      %s69 = sphi 0, %s67
      %s70 = sphi 0, %s69
      %s84 = sphi 0, %s70
      %s90 = sphi 0, %s92
      %s93 = sphi 0, %s90
      %s94 = sphi 0, %s93
      %s110 = sphi 0, %s94
    $region4: #{tpu_custom_call.1} parent=1 // loop_header_branch
      %15 = sbr.rel (%p13) target = $region8
    $region5: #{tpu_custom_call.1} parent=1 // loop_body
      %s17 = ssub.s32 %s12, 1
      %s18 = ssub.s32 %s12, 2
      %s19 = sadd.s32 %s12, 1
      %s20 = ssub.s32 %s12, %s19
      %p21 = scmp.eq.s32.totalorder %s20, 0
      %s23 = sadd.s32 %s22, 1
      %s24 = scalar_select %p21, %s22, %s23
      %p27 = pneg %p21
      %p28 = scmp.eq.s32.totalorder %s12, 3
      %p29 = por %p27, %p28
      %p30 = scmp.ne.s32.totalorder %s22, %s25
      %p31 = scmp.eq.s32.totalorder %s12, 0
      %p32 = por %p30, %p31
      %p33 = scmp.ne.s32.totalorder %s22, %s25
      %p34 = scmp.eq.s32.totalorder %s17, 3
      %p35 = por %p33, %p34
      %p36 = scmp.ne.s32.totalorder %s25, %s26
      %p37 = scmp.eq.s32.totalorder %s17, 0
      %p38 = por %p36, %p37
      %p39 = scmp.ne.s32.totalorder %s25, %s26
      %p40 = scmp.eq.s32.totalorder %s18, 3
      %p41 = por %p39, %p40
      %p43 = scmp.ne.s32.totalorder %s26, %s42
      %p44 = scmp.eq.s32.totalorder %s18, 0
      %p45 = por %p43, %p44
      %s47 = sadd.s32 %s46, 1
      %p50 = scmp.eq.s32.totalorder %s12, 3
      %p51 = scmp.ne.s32.totalorder %s46, %s48
      %p52 = scmp.eq.s32.totalorder %s12, 0
      %p53 = por %p51, %p52
      %p54 = scmp.ne.s32.totalorder %s46, %s48
      %p55 = scmp.eq.s32.totalorder %s17, 3
      %p56 = por %p54, %p55
      %p57 = scmp.ne.s32.totalorder %s48, %s49
      %p58 = scmp.eq.s32.totalorder %s17, 0
      %p59 = por %p57, %p58
      %p60 = scmp.ne.s32.totalorder %s48, %s49
      %p61 = scmp.eq.s32.totalorder %s18, 3
      %p62 = por %p60, %p61
      %p64 = scmp.ne.s32.totalorder %s49, %s63
      %p65 = scmp.eq.s32.totalorder %s18, 0
      %p66 = por %p64, %p65
      %s68 = sadd.s32 %s67, 1
      %p71 = scmp.eq.s32.totalorder %s12, 3
      %p72 = scmp.ne.s32.totalorder %s67, %s69
      %p73 = scmp.eq.s32.totalorder %s12, 0
      %p74 = por %p72, %p73
      %p75 = scmp.ne.s32.totalorder %s67, %s69
      %p76 = scmp.eq.s32.totalorder %s17, 3
      %p77 = por %p75, %p76
      %p78 = scmp.ne.s32.totalorder %s69, %s70
      %p79 = scmp.eq.s32.totalorder %s17, 0
      %p80 = por %p78, %p79
      %p81 = scmp.ne.s32.totalorder %s69, %s70
      %p82 = scmp.eq.s32.totalorder %s18, 3
      %p83 = por %p81, %p82
      %p85 = scmp.ne.s32.totalorder %s70, %s84
      %p86 = scmp.eq.s32.totalorder %s18, 0
      %p87 = por %p85, %p86
      %s88 = ssub.s32 %s12, %s19
      %p89 = scmp.eq.s32.totalorder %s88, 0
      %s91 = sadd.s32 %s90, 1
      %s92 = scalar_select %p89, %s90, %s91
      %p95 = pneg %p89
      %p96 = scmp.eq.s32.totalorder %s12, 3
      %p97 = por %p95, %p96
      %p98 = scmp.ne.s32.totalorder %s90, %s93
      %p99 = scmp.eq.s32.totalorder %s12, 0
      %p100 = por %p98, %p99
      %p101 = scmp.ne.s32.totalorder %s90, %s93
      %p102 = scmp.eq.s32.totalorder %s17, 3
      %p103 = por %p101, %p102
      %p104 = scmp.ne.s32.totalorder %s93, %s94
      %p105 = scmp.eq.s32.totalorder %s17, 0
      %p106 = por %p104, %p105
      %p107 = scmp.ne.s32.totalorder %s93, %s94
      %p108 = scmp.eq.s32.totalorder %s18, 3
      %p109 = por %p107, %p108
      %p111 = scmp.ne.s32.totalorder %s94, %s110
      %p112 = scmp.eq.s32.totalorder %s18, 0
      %p113 = por %p111, %p112
      %p114 = scmp.le.s32.totalorder 1, %s12
      %p115 = scmp.lt.s32.totalorder %s12, 5
      %p116 = pnand %p114, %p115
      %p117 = pneg %p116
      // Predicated region
      $region9: #{tpu_custom_call.1} parent=5 // pred_check
        _
      $region10: #{tpu_custom_call.1} parent=5 // pred_check_branch
        %119 = sbr.rel (%p116) target = $region12
      $region11: #{tpu_custom_call.1} parent=5 // pred_region
        %s120 = ssub.s32 %s12, 1
        // Predicated region
        $region13: #{tpu_custom_call.1} parent=11 // pred_check
          %p121 = pneg %p59
        $region14: #{tpu_custom_call.1} parent=11 // pred_check_branch
          %123 = sbr.rel (%p121) target = $region16
        $region15: #{tpu_custom_call.1} parent=11 // pred_region
          _
        $region16: #{tpu_custom_call.1} parent=11 // pred_fallthru
          _
        // Predicated region
        $region17: #{tpu_custom_call.1} parent=11 // pred_check
          %p124 = pneg %p80
        $region18: #{tpu_custom_call.1} parent=11 // pred_check_branch
          %126 = sbr.rel (%p124) target = $region20
        $region19: #{tpu_custom_call.1} parent=11 // pred_region
          _
        $region20: #{tpu_custom_call.1} parent=11 // pred_fallthru
          _
      $region12: #{tpu_custom_call.1} parent=5 // pred_fallthru
        _
      %p127 = scmp.lt.s32.totalorder %s12, 4
      // Predicated region
      $region21: #{tpu_custom_call.1} parent=5 // pred_check
        %p128 = pneg %p127
      $region22: #{tpu_custom_call.1} parent=5 // pred_check_branch
        %130 = sbr.rel (%p128) target = $region24
      $region23: #{tpu_custom_call.1} parent=5 // pred_region
        // Predicated region
        $region25: #{tpu_custom_call.1} parent=23 // pred_check
          %p131 = pneg %p32
        $region26: #{tpu_custom_call.1} parent=23 // pred_check_branch
          %133 = sbr.rel (%p131) target = $region28
        $region27: #{tpu_custom_call.1} parent=23 // pred_region
          %p134 = scmp.lt.s32.totalorder %s12, 3
          %s135 = scalar_select %p134, %s12, 3
          %s136 = smul.addr %s135, 2
          %s137 = smul.addr %s136, 8
          %s138 = scalar_lea.vmem %s0, %s137
        $region28: #{tpu_custom_call.1} parent=23 // pred_fallthru
          _
      $region24: #{tpu_custom_call.1} parent=5 // pred_fallthru
        _
      %p139 = scmp.le.s32.totalorder 1, %s12
      %p140 = scmp.lt.s32.totalorder %s12, 5
      %p141 = pnand %p139, %p140
      %p142 = pneg %p141
      // Predicated region
      $region29: #{tpu_custom_call.1} parent=5 // pred_check
        _
      $region30: #{tpu_custom_call.1} parent=5 // pred_check_branch
        %144 = sbr.rel (%p141) target = $region32
      $region31: #{tpu_custom_call.1} parent=5 // pred_region
        %s145 = ssub.s32 %s12, 1
        %p146 = scmp.lt.s32.totalorder %s17, 3
        %s147 = scalar_select %p146, %s17, 3
        %s148 = smul.addr %s147, 2
        %s149 = smul.addr %s148, 8
        %s150 = scalar_lea.vmem %s0, %s149
        %p151 = pneg %p38
        %p152 = pneg %p35
        %p153 = pneg %p59
        %p154 = pneg %p56
        %p155 = pneg %p80
        %p156 = pneg %p77
        %p157 = pneg %p106
        %p158 = pneg %p103
        %s159 = sand.u32 %s93, 1
        %s160 = scalar_lea.sflag [#allocation3], %s159
        %s161 = sand.u32 %s93, 1
        %s162 = smul.addr %s161, 8
        %s163 = scalar_lea.vmem [#allocation2], %s162
        %p164 = scmp.lt.s32.totalorder %s17, 3
        %s165 = scalar_select %p164, %s17, 3
        %s166 = smul.addr %s165, 2
        %s167 = smul.addr %s166, 8
        %s168 = scalar_lea.vmem %s0, %s167
        %v169 = vld [vmem:[%s1] sm:$0xff]
        %v170 = vld [vmem:[%s1 + $0x8] sm:$0xff]
        %v171 = vld [vmem:[%s2] sm:$0x1]
        %v172 = vld [vmem:[%s168] sm:$0xff]
        %v173 = vld [vmem:[%s168 + $0x8] sm:$0xff]
        %v175 = vlaneseq
        %v176 = vshrl.u32 %v175, 7
        %v177 = vsub.s32 0, %v176
        %v178 = vrot.slane %v171, %v177
        %180 = vxpose.xlu0.b32.start [1/16] %v172, 128
        %181 = vxpose.xlu0.b32.cont [2/16] %v173, 128
        %182 = vxpose.xlu0.b32.cont [3/16] 0.0, 128
        %183 = vxpose.xlu0.b32.cont [4/16] 0.0, 128
        %184 = vxpose.xlu0.b32.cont [5/16] 0.0, 128
        %185 = vxpose.xlu0.b32.cont [6/16] 0.0, 128
        %186 = vxpose.xlu0.b32.cont [7/16] 0.0, 128
        %187 = vxpose.xlu0.b32.cont [8/16] 0.0, 128
        %188 = vxpose.xlu0.b32.cont [9/16] 0.0, 128
        %189 = vxpose.xlu0.b32.cont [10/16] 0.0, 128
        %190 = vxpose.xlu0.b32.cont [11/16] 0.0, 128
        %191 = vxpose.xlu0.b32.cont [12/16] 0.0, 128
        %192 = vxpose.xlu0.b32.cont [13/16] 0.0, 128
        %193 = vxpose.xlu0.b32.cont [14/16] 0.0, 128
        %194 = vxpose.xlu0.b32.cont [15/16] 0.0, 128
        %195 = vxpose.xlu0.b32.end [16/16] 0.0, 128
        %v196 = vpop.trf.xlu0
        %v197 = vpop.trf.xlu0
        %v198 = vpop.trf.xlu0
        %v199 = vpop.trf.xlu0
        %v200 = vpop.trf.xlu0
        %v201 = vpop.trf.xlu0
        %v202 = vpop.trf.xlu0
        %v203 = vpop.trf.xlu0
        %v204 = vpop.trf.xlu0
        %v205 = vpop.trf.xlu0
        %v206 = vpop.trf.xlu0
        %v207 = vpop.trf.xlu0
        %v208 = vpop.trf.xlu0
        %v209 = vpop.trf.xlu0
        %v210 = vpop.trf.xlu0
        %v211 = vpop.trf.xlu0
        %vm212 = vcmask 130048
        %v214 = vsel %vm212, %v196, 0
        %216 = vmatprep.subr.mxu0 0.0
        %217 = vmatpush1.msra.mxu0 %v169
        %218 = vmatprep.subr.mxu0 0.0
        %219 = vmatpush1.msra.mxu0 %v170
        %220 = vmatprep.subr.mxu0 0.0
        %221 = vmatpush1.msra.mxu0 0.0
        %222 = vmatprep.subr.mxu0 0.0
        %223 = vmatpush1.msra.mxu0 0.0
        %224 = vmatprep.subr.mxu0 0.0
        %225 = vmatpush1.msra.mxu0 0.0
        %226 = vmatprep.subr.mxu0 0.0
        %227 = vmatpush1.msra.mxu0 0.0
        %228 = vmatprep.subr.mxu0 0.0
        %229 = vmatpush1.msra.mxu0 0.0
        %230 = vmatprep.subr.mxu0 0.0
        %231 = vmatpush1.msra.mxu0 0.0
        %232 = vmatprep.subr.mxu0 0.0
        %233 = vmatpush1.msra.mxu0 0.0
        %234 = vmatprep.subr.mxu0 0.0
        %235 = vmatpush1.msra.mxu0 0.0
        %236 = vmatprep.subr.mxu0 0.0
        %237 = vmatpush1.msra.mxu0 0.0
        %238 = vmatprep.subr.mxu0 0.0
        %239 = vmatpush1.msra.mxu0 0.0
        %240 = vmatprep.subr.mxu0 0.0
        %241 = vmatpush1.msra.mxu0 0.0
        %242 = vmatprep.subr.mxu0 0.0
        %243 = vmatpush1.msra.mxu0 0.0
        %244 = vmatprep.subr.mxu0 0.0
        %245 = vmatpush1.msra.mxu0 0.0
        %246 = vmatprep.subr.mxu0 0.0
        %247 = vmatpush1.msra.mxu0 0.0
        %248 = vmatprep.subr.mxu0 0.0
        %249 = vmatpush1.msra.mxu0 0.0
        %250 = vmatprep.subr.mxu0 0.0
        %251 = vmatpush1.msra.mxu0 0.0
        %252 = vmatprep.subr.mxu0 0.0
        %253 = vmatpush1.msra.mxu0 0.0
        %254 = vmatprep.subr.mxu0 0.0
        %255 = vmatpush1.msra.mxu0 0.0
        %256 = vmatprep.subr.mxu0 0.0
        %257 = vmatpush1.msra.mxu0 0.0
        %258 = vmatprep.subr.mxu0 0.0
        %259 = vmatpush1.msra.mxu0 0.0
        %260 = vmatprep.subr.mxu0 0.0
        %261 = vmatpush1.msra.mxu0 0.0
        %262 = vmatprep.subr.mxu0 0.0
        %263 = vmatpush1.msra.mxu0 0.0
        %264 = vmatprep.subr.mxu0 0.0
        %265 = vmatpush1.msra.mxu0 0.0
        %266 = vmatprep.subr.mxu0 0.0
        %267 = vmatpush1.msra.mxu0 0.0
        %268 = vmatprep.subr.mxu0 0.0
        %269 = vmatpush1.msra.mxu0 0.0
        %270 = vmatprep.subr.mxu0 0.0
        %271 = vmatpush1.msra.mxu0 0.0
        %272 = vmatprep.subr.mxu0 0.0
        %273 = vmatpush1.msra.mxu0 0.0
        %274 = vmatprep.subr.mxu0 0.0
        %275 = vmatpush1.msra.mxu0 0.0
        %276 = vmatprep.subr.mxu0 0.0
        %277 = vmatpush1.msra.mxu0 0.0
        %278 = vmatprep.subr.mxu0 0.0
        %279 = vmatpush1.msra.mxu0 0.0
        %280 = vmatprep.mubr.f32.mxu0 0.0
        %281 = vmatmul.mubr.f32.gmra.mrb[0].mxu0 %v214
        %v282 = vpop.f32.mrb[0].mxu0
        %v283 = vadd.f32 %v178, %v282
        %v284 = vpop.f32.mrb[0].mxu0
        %285 = vdwg.mxu0
        %286 = vst [vmem:[%s163] sm:$0xff] %v283
        %s287 = sand.u32 %s93, 1
        %s288 = scalar_lea.sflag [#allocation3], %s287
        %s289 = sand.u32 %s93, 1
        %s290 = smul.addr %s289, 8
        %s291 = scalar_lea.vmem [#allocation2], %s290
        // Predicated region
        $region33: #{tpu_custom_call.1} parent=31 // pred_check
          %p292 = pneg %p103
        $region34: #{tpu_custom_call.1} parent=31 // pred_check_branch
          %294 = sbr.rel (%p292) target = $region36
        $region35: #{tpu_custom_call.1} parent=31 // pred_region
          %s296 = ssub.s32 128, 128
          %297 = vsyncadd %s288, %s296
          %s298 = smul.addr %s17, 128
          %s299 = scalar_lea.hbm %s3, %s298
          %s301 = sshll.u32 %s291, 4
          %s302 = int_to_ptr.vmem [resolvable:$true] %s301
          %304 = dma.vmem_to_hbm [thread:$0]  %s302, 128, %s299, %s288
        $region36: #{tpu_custom_call.1} parent=31 // pred_fallthru
          _
      $region32: #{tpu_custom_call.1} parent=5 // pred_fallthru
        _
      %p305 = scmp.le.s32.totalorder 2, %s12
      // Predicated region
      $region37: #{tpu_custom_call.1} parent=5 // pred_check
        %p306 = pneg %p305
      $region38: #{tpu_custom_call.1} parent=5 // pred_check_branch
        %308 = sbr.rel (%p306) target = $region40
      $region39: #{tpu_custom_call.1} parent=5 // pred_region
        %s309 = ssub.s32 %s12, 2
        // Predicated region
        $region41: #{tpu_custom_call.1} parent=39 // pred_check
          %p310 = pneg %p109
        $region42: #{tpu_custom_call.1} parent=39 // pred_check_branch
          %312 = sbr.rel (%p310) target = $region44
        $region43: #{tpu_custom_call.1} parent=39 // pred_region
          %s313 = sand.u32 %s94, 1
          %s314 = scalar_lea.sflag [#allocation3], %s313
          %s315 = sand.u32 %s94, 1
          %s316 = smul.addr %s315, 8
          %s317 = scalar_lea.vmem [#allocation2], %s316
          %318 = dma.done %s314, 128
        $region44: #{tpu_custom_call.1} parent=39 // pred_fallthru
          _
      $region40: #{tpu_custom_call.1} parent=5 // pred_fallthru
        _
    $region6: #{tpu_custom_call.1} parent=1 // loop_footer
      %s16 = sadd.s32 1, %s12
    $region7: #{tpu_custom_call.1} parent=1 // loop_footer_branch
      %11 = sbr.rel target = $region3
    $region8: #{tpu_custom_call.1} parent=1 // loop_exit
      _
    %319 = vsyncpa [#allocation3], 1
    %s320 = scalar_lea.sflag [#allocation3], 1
    %321 = vsyncpa %s320, 1

</llo_original>
